<compile_context>
chip_gen: v7x
topology: tpu7x:2x2x1
jax: 0.10.0
libtpu: 0.0.40
codegen_flags: <defaults>
</compile_context>

<pallas_src>
import math

import numpy as np
import jax
import jax.numpy as jnp
from jax.experimental import pallas as pl
from jax.experimental.pallas import tpu as pltpu

V_JOINTS = 17  # hard-coded V = 17 inside MLCA.forward


def _round_up(x: int, m: int) -> int:
    return ((x + m - 1) // m) * m


def _adaptive_pool_matrix(in_size: int, out_size: int) -> np.ndarray:
    """Row-normalized indicator matrix replicating torch AdaptiveAvgPool bins."""
    idx = np.arange(in_size)
    rows = []
    for i in range(out_size):
        start = (i * in_size) // out_size
        end = -((-(i + 1) * in_size) // out_size)  # ceil((i+1)*in/out)
        m = ((idx >= start) & (idx < end)).astype(np.float32)
        rows.append(m / m.sum())
    return np.stack(rows, axis=0)  # (out_size, in_size)


def _build_pool_weights(T: int, V: int, L: int, n_pad: int) -> jnp.ndarray:
    """W rows: [kron(A_T, A_V) (L*L rows) ; global-mean row], zero-padded to (n_pad, T*V).

    local[l, m]  = sum_{t,v} A_T[l,t] * A_V[m,v] * x[t*V + v]
    global       = mean over the L*L local bins  == (mean of kron rows) . x
    The contraction axis is kept at the exact K = T*V (no padding needed: the
    block covers the full array extent along K).
    """
    a_t = _adaptive_pool_matrix(T, L)                 # (L, T)
    a_v = _adaptive_pool_matrix(V, L)                 # (L, V)
    w_local = np.kron(a_t, a_v)                       # (L*L, T*V), row l*L+m
    w_global = w_local.mean(axis=0, keepdims=True)    # (1, T*V)
    w = np.concatenate([w_local, w_global], axis=0)   # (L*L + 1, T*V)
    w_padded = np.zeros((n_pad, T * V), np.float32)
    w_padded[: w.shape[0], :] = w
    return jnp.asarray(w_padded)


def _mlca_pool_kernel(w_ref, x_ref, pooled_ref):
    # w_ref:      (Npad, K)   pooling weights (constant across grid steps)
    # x_ref:      (B,    K)   B flattened (n, c) slabs (K = T*V, full extent)
    # pooled_ref: (Npad, B)   lane-dense pooled output (NC along lanes)
    pooled_ref[...] = jax.lax.dot_general(
        w_ref[...],
        x_ref[...],
        dimension_numbers=(((1,), (1,)), ((), ())),   # contract the K axes
        preferred_element_type=jnp.float32,
    )


def _choose_block(nc: int, block_nc: int) -> int:
    """Pick the NC-slab size B.

    TPU (8,128) block-shape rule:
      * input block (B, K): B must be a multiple of 8 OR equal the full NC extent.
      * output block (Npad, B): B must be a multiple of 128 OR equal NC.
    So B is either exactly NC (single grid step) or a multiple of 128.
    When NC is large enough we keep >=2 grid steps so v7x's two TensorCores
    both get work under dimension_semantics=("parallel",).
    """
    block_nc = max(128, (block_nc // 128) * 128)
    if nc <= block_nc:
        if nc >= 2 * 1024:
            # Split into two lane-aligned slabs (still >=1024 rows each, so the
            # per-step overhead stays amortized).
            return _round_up(pl.cdiv(nc, 2), 128)
        return nc
    return block_nc


def action_recognition_forward(x: jnp.ndarray, local_size: int = 5, block_nc: int = 2048):
    """x: (N, C, T, V), V must be 17 (as hard-coded in MLCA).

    Returns (module_output, local_arv, global_arv).  module_output == x
    (pass-through, exactly as in the PyTorch forward); the pooling results are
    auxiliary (the PyTorch module discards them) but kept live so the compute
    mirrors the original forward.
    """
    N, C, T, V = x.shape
    assert V == V_JOINTS, "MLCA hard-codes V = 17"
    L = local_size
    NC = N * C
    K = T * V

    # Pooled rows: L*L local bins + 1 global row, padded to a sublane multiple.
    Npool = L * L + 1
    Npad = _round_up(max(Npool, 8), 8)

    w = _build_pool_weights(T, V, L, Npad)            # (Npad, K), exact K

    # Row-major reshape is a free view in XLA; no HBM copy of x is made.
    x_flat = x.reshape(NC, K)
    if x_flat.dtype != jnp.float32:
        x_flat = x_flat.astype(jnp.float32)

    B = _choose_block(NC, block_nc)
    grid_len = pl.cdiv(NC, B)

    # VMEM budget: x slab double-buffered + weights (x2) + output (x2) + slack.
    vmem_est = 2 * B * K * 4 + 2 * Npad * K * 4 + 2 * Npad * B * 4 + (2 << 20)
    compiler_kwargs = dict(dimension_semantics=("parallel",))
    if vmem_est > (16 << 20):
        # Only needed for very large user-chosen blocks; default B=2048 fits the
        # conservative 16 MiB (v5e) scoped default with room to spare.
        compiler_kwargs["vmem_limit_bytes"] = int(vmem_est)

    cost = pl.CostEstimate(
        flops=2 * Npad * K * grid_len * B,
        transcendentals=0,
        bytes_accessed=NC * K * 4 + Npad * K * 4 + Npad * NC * 4,
    )

    grid_spec = pltpu.PrefetchScalarGridSpec(
        num_scalar_prefetch=0,
        grid=(grid_len,),
        in_specs=[
            pl.BlockSpec((Npad, K), lambda i: (0, 0)),   # weights, resident
            pl.BlockSpec((B, K), lambda i: (i, 0)),      # x slabs (K = full extent)
        ],
        out_specs=pl.BlockSpec((Npad, B), lambda i: (0, i)),  # lane-dense pooled
    )

    pooled = pl.pallas_call(
        _mlca_pool_kernel,
        out_shape=jax.ShapeDtypeStruct((Npad, NC), jnp.float32),
        grid_spec=grid_spec,
        compiler_params=pltpu.CompilerParams(**compiler_kwargs),
        cost_estimate=cost,
    )(w, x_flat)

    # Unpack aux pooling results (tiny; plain JAX outside the kernel).
    local_arv = pooled[: L * L, :].T.reshape(N, C, L, L)
    global_arv = pooled[L * L, :].reshape(N, C, 1, 1)

    # Module return value: x itself (pass-through) -> no copy through the kernel.
    return x, local_arv, global_arv


def _init_unused_conv_weights(in_channels: int, gamma: int = 2, b: int = 1):
    """Deterministic init of the MLCA Conv1d weights (defined but unused in forward)."""
    t = int(abs(math.log(in_channels, 2) + b) / gamma)
    k = t if t % 2 else t + 1
    key = jax.random.PRNGKey(0)
    k1, k2 = jax.random.split(key)
    bound = 1.0 / math.sqrt(k)
    w_conv = jax.random.uniform(k1, (1, 1, k), jnp.float32, -bound, bound)
    w_conv_local = jax.random.uniform(k2, (1, 1, k), jnp.float32, -bound, bound)
    # TODO(synk): conv / conv_local are never invoked in MLCA.forward, so they are
    # intentionally absent from the kernel; initialized here only for completeness.
    return w_conv, w_conv_local


if __name__ == "__main__":
    L = 5
    # Small shapes consistent with the module: N=2, C=8 channels, T=20 frames, V=17 joints.
    N, C, T, V = 2, 8, 20, V_JOINTS
    key = jax.random.PRNGKey(0)
    x = jax.random.normal(key, (N, C, T, V), dtype=jnp.float32)

    _ = _init_unused_conv_weights(in_channels=C)

    out, local_arv, global_arv = action_recognition_forward(x, local_size=L)
    jax.block_until_ready(out)
    jax.block_until_ready(local_arv)
    jax.block_until_ready(global_arv)

    # Module semantics: output == input (pass-through, returned directly).
    assert out.shape == (N, C, T, V)
    np.testing.assert_allclose(np.asarray(out), np.asarray(x), rtol=0, atol=0)

    # Check the (discarded-by-module) pooling against a plain-numpy reference.
    a_t = _adaptive_pool_matrix(T, L)
    a_v = _adaptive_pool_matrix(V, L)
    ref_local = np.einsum("lt,nctv,mv->nclm", a_t, np.asarray(x), a_v)
    np.testing.assert_allclose(np.asarray(local_arv), ref_local, rtol=1e-5, atol=1e-5)
    ref_global = ref_local.mean(axis=(2, 3), keepdims=True)
    np.testing.assert_allclose(np.asarray(global_arv), ref_global, rtol=1e-5, atol=1e-5)

    # Second shape exercising the multi-step + boundary-masked path:
    # NC = 400 with block_nc=128 -> B=128, grid=4, last block partially out of
    # bounds along NC (garbage rows only feed output columns that are never kept).
    N2, C2 = 4, 100
    x2 = jax.random.normal(jax.random.PRNGKey(1), (N2, C2, T, V), dtype=jnp.float32)
    out2, local2, global2 = action_recognition_forward(x2, local_size=L, block_nc=128)
    jax.block_until_ready(local2)
    jax.block_until_ready(global2)
    np.testing.assert_allclose(np.asarray(out2), np.asarray(x2), rtol=0, atol=0)
    ref_local2 = np.einsum("lt,nctv,mv->nclm", a_t, np.asarray(x2), a_v)
    np.testing.assert_allclose(np.asarray(local2), ref_local2, rtol=1e-5, atol=1e-5)
    ref_global2 = ref_local2.mean(axis=(2, 3), keepdims=True)
    np.testing.assert_allclose(np.asarray(global2), ref_global2, rtol=1e-5, atol=1e-5)

    print("KERNEL_OK")
</pallas_src>

<mosaic_0001>
module attributes {stable_mosaic.version = 11 : i64} {
  func.func @_mlca_pool_kernel(%arg0: i32, %arg1: memref<32x340xf32, #tpu.memory_space<vmem>>, %arg2: memref<16x340xf32, #tpu.memory_space<vmem>>, %arg3: memref<32x16xf32, #tpu.memory_space<vmem>>) attributes {dimension_semantics = [#tpu.dimension_semantics<parallel>], iteration_bounds = array<i64: 1>, scalar_prefetch = 0 : i64, scratch_operands = 0 : i64, tpu.core_type = #tpu.core_type<tc>, window_params = [{pipeline_mode = #tpu.pipeline_mode<synchronous>, transform_indices = @transform_0, window_bounds = array<i64: 32, 340>}, {transform_indices = @transform_1, window_bounds = array<i64: 16, 340>}, {transform_indices = @transform_2, window_bounds = array<i64: 32, 16>}]} {
    %c0 = arith.constant 0 : index
    %c0_0 = arith.constant 0 : index
    %0 = vector.load %arg1[%c0, %c0_0] : memref<32x340xf32, #tpu.memory_space<vmem>>, vector<32x340xf32>
    %c0_1 = arith.constant 0 : index
    %c0_2 = arith.constant 0 : index
    %1 = vector.load %arg2[%c0_1, %c0_2] : memref<16x340xf32, #tpu.memory_space<vmem>>, vector<16x340xf32>
    %cst = arith.constant dense<0.000000e+00> : vector<32x16xf32>
    %2 = tpu.matmul %0, %1, %cst {dimension_numbers = #tpu.dot_dimension_numbers<[1], [1], [0], [0], [0, 0, 1, 0], [], []>} : vector<32x340xf32>, vector<16x340xf32>, vector<32x16xf32> -> vector<32x16xf32>
    %c0_3 = arith.constant 0 : index
    %c0_4 = arith.constant 0 : index
    %3 = vector.load %arg3[%c0_3, %c0_4] : memref<32x16xf32, #tpu.memory_space<vmem>>, vector<32x16xf32>
    tpu.vector_store %arg3[%c0_3, %c0_4], %2 {strides = array<i32>} : memref<32x16xf32, #tpu.memory_space<vmem>>, vector<32x16xf32>,
    return
  }
  func.func @transform_0(%arg0: i32) -> (i32, i32) {
    %c0_i32 = arith.constant 0 : i32
    %c0_i32_0 = arith.constant 0 : i32
    %c0_i32_1 = arith.constant 0 : i32
    return %c0_i32, %c0_i32_0 : i32, i32
  }
  func.func @transform_1(%arg0: i32) -> (i32, i32) {
    %c0_i32 = arith.constant 0 : i32
    %c0_i32_0 = arith.constant 0 : i32
    return %arg0, %c0_i32 : i32, i32
  }
  func.func @transform_2(%arg0: i32) -> (i32, i32) {
    %c0_i32 = arith.constant 0 : i32
    %c0_i32_0 = arith.constant 0 : i32
    return %c0_i32, %arg0 : i32, i32
  }
}

</mosaic_0001>

<llo_original>
// kernel: tpu_custom_call.1
$region0: #{tpu_custom_call.1}
  #allocation0 [shape = 'u32[]', space=smem, size = 0x4, offset = 0x4, fixed_abs, tag = 'smem constant byte address 0x4 - core index']
  #allocation1 [shape = 'u32[144,128]{1,0:T(1,128)}', space=vmem, size = 0x12000, scoped, tag = 'internal scratch']
  %s0 = inlined_call_operand.hbm [shape: f32[32,340], index: 0, kind: input, shape index: {}]
  %s1 = inlined_call_operand.hbm [shape: f32[16,340], index: 1, kind: input, shape index: {}]
  %s2 = inlined_call_operand.vmem [shape: f32[32,16], index: 2, kind: output, shape index: {}]
  %s3 = sld [smem:[#allocation0]]
  $region26: #{tpu_custom_call.1} parent=0
    _
  %s5 = ssub.s32 1, %s3
  %s6 = scalar_select 0, %s5, %s3
  $region1: #{tpu_custom_call.1} parent=0
    #allocation2 [shape = 'u8[49152]{0}', space=vmem, size = 0xc000, scoped, tag = 'input window, operand 0, single buffered']
    #allocation3 [shape = 's32[1]{0}', space=sflag, size = 0x4, scoped, tag = 'scoped memory for tpu_custom_call.1']
    #allocation4 [shape = 'u8[24576]{0}', space=vmem, size = 0x6000, scoped, tag = 'input window, operand 1, single buffered']
    #allocation5 [shape = 's32[1]{0}', space=sflag, size = 0x4, scoped, tag = 'scoped memory for tpu_custom_call.1']
    %7 = vsyncpa [#allocation3], 0
    %8 = vsyncpa [#allocation5], 0
    // Predicated region
    $region2: #{tpu_custom_call.1} parent=1 // pred_check
      _
    $region3: #{tpu_custom_call.1} parent=1 // pred_check_branch
      %10 = sbr.rel (0) target = $region5
    $region4: #{tpu_custom_call.1} parent=1 // pred_region
      %s12 = ssub.s32 1536, 1536
      %13 = vsyncadd [#allocation3], %s12
      %s14 = sshll.u32 [#allocation2], 4
      %s15 = int_to_ptr.vmem [resolvable:$true] %s14
      %20 = dma.hbm_to_vmem [thread:$0]  %s0, 1536, %s15, [#allocation3], 384, 384, 24
    $region5: #{tpu_custom_call.1} parent=1 // pred_fallthru
      _
    // Predicated region
    $region6: #{tpu_custom_call.1} parent=1 // pred_check
      _
    $region7: #{tpu_custom_call.1} parent=1 // pred_check_branch
      %22 = sbr.rel (0) target = $region9
    $region8: #{tpu_custom_call.1} parent=1 // pred_region
      %s24 = ssub.s32 768, 768
      %25 = vsyncadd [#allocation5], %s24
      %s26 = sshll.u32 [#allocation4], 4
      %s27 = int_to_ptr.vmem [resolvable:$true] %s26
      %32 = dma.hbm_to_vmem [thread:$0]  %s1, 768, %s27, [#allocation5], 384, 384, 24
    $region9: #{tpu_custom_call.1} parent=1 // pred_fallthru
      _
    // Predicated region
    $region10: #{tpu_custom_call.1} parent=1 // pred_check
      _
    $region11: #{tpu_custom_call.1} parent=1 // pred_check_branch
      %34 = sbr.rel (0) target = $region13
    $region12: #{tpu_custom_call.1} parent=1 // pred_region
      %35 = dma.done [#allocation3], 1536
    $region13: #{tpu_custom_call.1} parent=1 // pred_fallthru
      _
    // Predicated region
    $region14: #{tpu_custom_call.1} parent=1 // pred_check
      _
    $region15: #{tpu_custom_call.1} parent=1 // pred_check_branch
      %37 = sbr.rel (0) target = $region17
    $region16: #{tpu_custom_call.1} parent=1 // pred_region
      %38 = dma.done [#allocation5], 768
    $region17: #{tpu_custom_call.1} parent=1 // pred_fallthru
      _
    %v39 = vld [vmem:[#allocation2] sm:$0xff]
    %v40 = vld [vmem:[#allocation2 + $0x8] sm:$0xff]
    %v41 = vld [vmem:[#allocation2 + $0x10] sm:$0xff]
    %v42 = vld [vmem:[#allocation2 + $0x18] sm:$0xff]
    %v43 = vld [vmem:[#allocation2 + $0x20] sm:$0xff]
    %v44 = vld [vmem:[#allocation2 + $0x28] sm:$0xff]
    %v45 = vld [vmem:[#allocation2 + $0x30] sm:$0xff]
    %v46 = vld [vmem:[#allocation2 + $0x38] sm:$0xff]
    %v47 = vld [vmem:[#allocation2 + $0x40] sm:$0xff]
    %v48 = vld [vmem:[#allocation2 + $0x48] sm:$0xff]
    %v49 = vld [vmem:[#allocation2 + $0x50] sm:$0xff]
    %v50 = vld [vmem:[#allocation2 + $0x58] sm:$0xff]
    %v51 = vld [vmem:[#allocation4] sm:$0xff]
    %v52 = vld [vmem:[#allocation4 + $0x8] sm:$0xff]
    %v53 = vld [vmem:[#allocation4 + $0x10] sm:$0xff]
    %v54 = vld [vmem:[#allocation4 + $0x18] sm:$0xff]
    %v55 = vld [vmem:[#allocation4 + $0x20] sm:$0xff]
    %v56 = vld [vmem:[#allocation4 + $0x28] sm:$0xff]
    %vm57 = vcmask 687104
    %v59 = vsel %vm57, %v41, 0
    %v62 = vsel %vm57, %v44, 0
    %v65 = vsel %vm57, %v47, 0
    %v68 = vsel %vm57, %v50, 0
    %v71 = vsel %vm57, %v53, 0
    %v74 = vsel %vm57, %v56, 0
    %76 = vmatprep.subr.mxu0 %v52
    %77 = vmatpush1.xpose.msra.mxu0 %v51
    %78 = vmatprep.subr.mxu0 %v55
    %79 = vmatpush1.xpose.msra.mxu0 %v54
    %80 = vmatprep.subr.mxu0 0.0
    %81 = vmatpush1.xpose.msra.mxu0 0.0
    %82 = vmatprep.subr.mxu0 0.0
    %83 = vmatpush1.xpose.msra.mxu0 0.0
    %84 = vmatprep.subr.mxu0 0.0
    %85 = vmatpush1.xpose.msra.mxu0 0.0
    %86 = vmatprep.subr.mxu0 0.0
    %87 = vmatpush1.xpose.msra.mxu0 0.0
    %88 = vmatprep.subr.mxu0 0.0
    %89 = vmatpush1.xpose.msra.mxu0 0.0
    %90 = vmatprep.subr.mxu0 0.0
    %91 = vmatpush1.xpose.msra.mxu0 0.0
    %92 = vmatprep.subr.mxu0 0.0
    %93 = vmatpush1.xpose.msra.mxu0 0.0
    %94 = vmatprep.subr.mxu0 0.0
    %95 = vmatpush1.xpose.msra.mxu0 0.0
    %96 = vmatprep.subr.mxu0 0.0
    %97 = vmatpush1.xpose.msra.mxu0 0.0
    %98 = vmatprep.subr.mxu0 0.0
    %99 = vmatpush1.xpose.msra.mxu0 0.0
    %100 = vmatprep.subr.mxu0 0.0
    %101 = vmatpush1.xpose.msra.mxu0 0.0
    %102 = vmatprep.subr.mxu0 0.0
    %103 = vmatpush1.xpose.msra.mxu0 0.0
    %104 = vmatprep.subr.mxu0 0.0
    %105 = vmatpush1.xpose.msra.mxu0 0.0
    %106 = vmatprep.subr.mxu0 0.0
    %107 = vmatpush1.xpose.msra.mxu0 0.0
    %108 = vmatprep.subr.mxu0 0.0
    %109 = vmatpush1.xpose.msra.mxu0 0.0
    %110 = vmatprep.subr.mxu0 0.0
    %111 = vmatpush1.xpose.msra.mxu0 0.0
    %112 = vmatprep.subr.mxu0 0.0
    %113 = vmatpush1.xpose.msra.mxu0 0.0
    %114 = vmatprep.subr.mxu0 0.0
    %115 = vmatpush1.xpose.msra.mxu0 0.0
    %116 = vmatprep.subr.mxu0 0.0
    %117 = vmatpush1.xpose.msra.mxu0 0.0
    %118 = vmatprep.subr.mxu0 0.0
    %119 = vmatpush1.xpose.msra.mxu0 0.0
    %120 = vmatprep.subr.mxu0 0.0
    %121 = vmatpush1.xpose.msra.mxu0 0.0
    %122 = vmatprep.subr.mxu0 0.0
    %123 = vmatpush1.xpose.msra.mxu0 0.0
    %124 = vmatprep.subr.mxu0 0.0
    %125 = vmatpush1.xpose.msra.mxu0 0.0
    %126 = vmatprep.subr.mxu0 0.0
    %127 = vmatpush1.xpose.msra.mxu0 0.0
    %128 = vmatprep.subr.mxu0 0.0
    %129 = vmatpush1.xpose.msra.mxu0 0.0
    %130 = vmatprep.subr.mxu0 0.0
    %131 = vmatpush1.xpose.msra.mxu0 0.0
    %132 = vmatprep.subr.mxu0 0.0
    %133 = vmatpush1.xpose.msra.mxu0 0.0
    %134 = vmatprep.subr.mxu0 0.0
    %135 = vmatpush1.xpose.msra.mxu0 0.0
    %136 = vmatprep.subr.mxu0 0.0
    %137 = vmatpush1.xpose.msra.mxu0 0.0
    %138 = vmatprep.subr.mxu0 0.0
    %139 = vmatpush1.xpose.msra.mxu0 0.0
    %140 = vmatprep.mubr.f32.mxu0 %v40
    %141 = vmatmul.mubr.f32.gmra.mrb[0].mxu0 %v39
    %v142 = vpop.f32.mrb[0].mxu0
    %v143 = vadd.f32 0.0, %v142
    %v144 = vpop.f32.mrb[0].mxu0
    %145 = vmatprep.mubr.f32.mxu0 %v43
    %146 = vmatmul.mubr.f32.gmra.mrb[0].mxu0 %v42
    %v147 = vpop.f32.mrb[0].mxu0
    %v148 = vadd.f32 0.0, %v147
    %v149 = vpop.f32.mrb[0].mxu0
    %150 = vmatprep.mubr.f32.mxu0 %v46
    %151 = vmatmul.mubr.f32.gmra.mrb[0].mxu0 %v45
    %v152 = vpop.f32.mrb[0].mxu0
    %v153 = vadd.f32 0.0, %v152
    %v154 = vpop.f32.mrb[0].mxu0
    %155 = vmatprep.mubr.f32.mxu0 %v49
    %156 = vmatmul.mubr.f32.gmra.mrb[0].mxu0 %v48
    %v157 = vpop.f32.mrb[0].mxu0
    %v158 = vadd.f32 0.0, %v157
    %v159 = vpop.f32.mrb[0].mxu0
    %160 = vdwg.mxu0
    %161 = vmatprep.subr.mxu0 0.0
    %162 = vmatpush1.xpose.msra.mxu0 %v71
    %163 = vmatprep.subr.mxu0 0.0
    %164 = vmatpush1.xpose.msra.mxu0 %v74
    %165 = vmatprep.subr.mxu0 0.0
    %166 = vmatpush1.xpose.msra.mxu0 0.0
    %167 = vmatprep.subr.mxu0 0.0
    %168 = vmatpush1.xpose.msra.mxu0 0.0
    %169 = vmatprep.subr.mxu0 0.0
    %170 = vmatpush1.xpose.msra.mxu0 0.0
    %171 = vmatprep.subr.mxu0 0.0
    %172 = vmatpush1.xpose.msra.mxu0 0.0
    %173 = vmatprep.subr.mxu0 0.0
    %174 = vmatpush1.xpose.msra.mxu0 0.0
    %175 = vmatprep.subr.mxu0 0.0
    %176 = vmatpush1.xpose.msra.mxu0 0.0
    %177 = vmatprep.subr.mxu0 0.0
    %178 = vmatpush1.xpose.msra.mxu0 0.0
    %179 = vmatprep.subr.mxu0 0.0
    %180 = vmatpush1.xpose.msra.mxu0 0.0
    %181 = vmatprep.subr.mxu0 0.0
    %182 = vmatpush1.xpose.msra.mxu0 0.0
    %183 = vmatprep.subr.mxu0 0.0
    %184 = vmatpush1.xpose.msra.mxu0 0.0
    %185 = vmatprep.subr.mxu0 0.0
    %186 = vmatpush1.xpose.msra.mxu0 0.0
    %187 = vmatprep.subr.mxu0 0.0
    %188 = vmatpush1.xpose.msra.mxu0 0.0
    %189 = vmatprep.subr.mxu0 0.0
    %190 = vmatpush1.xpose.msra.mxu0 0.0
    %191 = vmatprep.subr.mxu0 0.0
    %192 = vmatpush1.xpose.msra.mxu0 0.0
    %193 = vmatprep.subr.mxu0 0.0
    %194 = vmatpush1.xpose.msra.mxu0 0.0
    %195 = vmatprep.subr.mxu0 0.0
    %196 = vmatpush1.xpose.msra.mxu0 0.0
    %197 = vmatprep.subr.mxu0 0.0
    %198 = vmatpush1.xpose.msra.mxu0 0.0
    %199 = vmatprep.subr.mxu0 0.0
    %200 = vmatpush1.xpose.msra.mxu0 0.0
    %201 = vmatprep.subr.mxu0 0.0
    %202 = vmatpush1.xpose.msra.mxu0 0.0
    %203 = vmatprep.subr.mxu0 0.0
    %204 = vmatpush1.xpose.msra.mxu0 0.0
    %205 = vmatprep.subr.mxu0 0.0
    %206 = vmatpush1.xpose.msra.mxu0 0.0
    %207 = vmatprep.subr.mxu0 0.0
    %208 = vmatpush1.xpose.msra.mxu0 0.0
    %209 = vmatprep.subr.mxu0 0.0
    %210 = vmatpush1.xpose.msra.mxu0 0.0
    %211 = vmatprep.subr.mxu0 0.0
    %212 = vmatpush1.xpose.msra.mxu0 0.0
    %213 = vmatprep.subr.mxu0 0.0
    %214 = vmatpush1.xpose.msra.mxu0 0.0
    %215 = vmatprep.subr.mxu0 0.0
    %216 = vmatpush1.xpose.msra.mxu0 0.0
    %217 = vmatprep.subr.mxu0 0.0
    %218 = vmatpush1.xpose.msra.mxu0 0.0
    %219 = vmatprep.subr.mxu0 0.0
    %220 = vmatpush1.xpose.msra.mxu0 0.0
    %221 = vmatprep.subr.mxu0 0.0
    %222 = vmatpush1.xpose.msra.mxu0 0.0
    %223 = vmatprep.subr.mxu0 0.0
    %224 = vmatpush1.xpose.msra.mxu0 0.0
    %225 = vmatprep.mubr.f32.mxu0 0.0
    %226 = vmatmul.mubr.f32.gmra.mrb[0].mxu0 %v59
    %v227 = vpop.f32.mrb[0].mxu0
    %v228 = vadd.f32 %v143, %v227
    %v229 = vpop.f32.mrb[0].mxu0
    %230 = vmatprep.mubr.f32.mxu0 0.0
    %231 = vmatmul.mubr.f32.gmra.mrb[0].mxu0 %v62
    %v232 = vpop.f32.mrb[0].mxu0
    %v233 = vadd.f32 %v148, %v232
    %v234 = vpop.f32.mrb[0].mxu0
    %235 = vmatprep.mubr.f32.mxu0 0.0
    %236 = vmatmul.mubr.f32.gmra.mrb[0].mxu0 %v65
    %v237 = vpop.f32.mrb[0].mxu0
    %v238 = vadd.f32 %v153, %v237
    %v239 = vpop.f32.mrb[0].mxu0
    %240 = vmatprep.mubr.f32.mxu0 0.0
    %241 = vmatmul.mubr.f32.gmra.mrb[0].mxu0 %v68
    %v242 = vpop.f32.mrb[0].mxu0
    %v243 = vadd.f32 %v158, %v242
    %v244 = vpop.f32.mrb[0].mxu0
    %245 = vdwg.mxu0
    %vm246 = vcmask 130048
    %247 = vst.msk [vmem:[%s2] sm:$0xff] %vm246, %v228
    %248 = vst.msk [vmem:[%s2 + $0x8] sm:$0xff] %vm246, %v233
    %249 = vst.msk [vmem:[%s2 + $0x10] sm:$0xff] %vm246, %v238
    %250 = vst.msk [vmem:[%s2 + $0x18] sm:$0xff] %vm246, %v243
    // Predicated region
    $region18: #{tpu_custom_call.1} parent=1 // pred_check
      _
    $region19: #{tpu_custom_call.1} parent=1 // pred_check_branch
      %252 = sbr.rel (0) target = $region21
    $region20: #{tpu_custom_call.1} parent=1 // pred_region
      _
    $region21: #{tpu_custom_call.1} parent=1 // pred_fallthru
      _
    // Predicated region
    $region22: #{tpu_custom_call.1} parent=1 // pred_check
      _
    $region23: #{tpu_custom_call.1} parent=1 // pred_check_branch
      %254 = sbr.rel (0) target = $region25
    $region24: #{tpu_custom_call.1} parent=1 // pred_region
      _
    $region25: #{tpu_custom_call.1} parent=1 // pred_fallthru
      _
    %255 = vsyncpa [#allocation3], 1
    %256 = vsyncpa [#allocation5], 1

</llo_original>
